<compile_context>
chip_gen: v7x
topology: tpu7x:2x2x1
jax: 0.10.0
libtpu: 0.0.40
codegen_flags: <defaults>
</compile_context>

<pallas_src>
import functools

import jax
import jax.numpy as jnp
from jax.experimental import pallas as pl
from jax.experimental.pallas import tpu as pltpu

D_USER = 32                      # user feature dim
D_MOV = 32                       # movie dense feature dim
HID = 32                         # per-tower hidden width
EMB = 16                         # embedding dim

COL_M1 = D_USER + D_MOV          # 64: movie-id column of the fused input
COL_ONE = COL_M1 + 1             # 65: constant-1 column (carries layer-1 biases)
X_IN = COL_ONE + 1               # 66: fused input width  [u | m2 | m1 | 1]
BIAS_HID = 2 * HID               # 64: constant-1 hidden unit (carries layer-2 biases)
HID_F = BIAS_HID + 1             # 65: fused hidden width [u_hid | m_hid | 1]
OUT_W = 2 * EMB                  # 32: fused embedding    [user_emb | movie_emb]


def two_tower_kernel(x_ref, w1_ref, w2_ref, out_ref, *, bf16_epilogue):
    x = x_ref[...]                                   # (TB, 66) bf16
    w1 = w1_ref[...]                                 # (66, 65) bf16 (resident)
    w2 = w2_ref[...]                                 # (65, 32) bf16 (resident)

    # Layer 1 of BOTH towers + layer-1 biases + the movie-id path: ONE MXU matmul.
    h = jnp.dot(x, w1, preferred_element_type=jnp.float32)       # (TB, 65) f32
    if bf16_epilogue:
        # v6e/v7x: bf16 VALU -> half the vregs for the ReLU epilogue.
        h = jnp.maximum(h.astype(jnp.bfloat16), 0.0)
    else:
        # v5e has no bf16 VALU: keep elementwise in f32, cast only for the MXU.
        h = jnp.maximum(h, 0.0).astype(jnp.bfloat16)
    # Column 64 of h is ReLU(1) == 1, so row 64 of W2 injects the layer-2 biases.

    # Layer 2 of both towers + layer-2 biases: ONE MXU matmul.
    e = jnp.dot(h, w2, preferred_element_type=jnp.float32)       # (TB, 32) f32

    # Interaction: per-row dot of the two embedding halves.
    # (16-lane slices of a 32-lane group: lane select/rotate on the XLU, no copy.)
    prod = e[:, :EMB] * e[:, EMB:OUT_W]                          # (TB, 16) f32

    # Lane-dense reduce: stream prod through the MXU against a tiny stationary
    # ones(16, 8) (plain NN matmul, no TB-wide transposed operand), then one
    # small (TB,8)->(8,TB) XLU transpose to put the batch on the lane axis.
    ones = jnp.ones((EMB, 8), jnp.float32)
    s = jnp.dot(prod, ones, preferred_element_type=jnp.float32)  # (TB, 8)
    logits = jnp.transpose(s)[0:1, :]                            # (1, TB)

    # sigmoid(z) = 1 / (1 + exp(-z)): exp and the approximate reciprocal both
    # ride the EUP slot, keeping the binding VALU slot free.
    out_ref[...] = pl.reciprocal(1.0 + jnp.exp(-logits), approx=True)


def init_raw_params(key):
    ks = jax.random.split(key, 9)
    s = 0.1
    return {
        # user tower
        "wu1": s * jax.random.normal(ks[0], (D_USER, HID), jnp.float32),
        "bu1": s * jax.random.normal(ks[1], (1, HID), jnp.float32),
        "wu2": s * jax.random.normal(ks[2], (HID, EMB), jnp.float32),
        "bu2": s * jax.random.normal(ks[3], (1, EMB), jnp.float32),
        # movie tower (first layer split: (B,1) id path + (B,32) dense path)
        "wm1a": s * jax.random.normal(ks[4], (1, HID), jnp.float32),
        "wm1b": s * jax.random.normal(ks[5], (D_MOV, HID), jnp.float32),
        "bm1": s * jax.random.normal(ks[6], (1, HID), jnp.float32),
        "wm2": s * jax.random.normal(ks[7], (HID, EMB), jnp.float32),
        "bm2": s * jax.random.normal(ks[8], (1, EMB), jnp.float32),
    }


def pack_params(p):
    """Fold both towers, both biases and the movie-id weight into two bf16 mats."""
    w1 = jnp.zeros((X_IN, HID_F), jnp.float32)
    w1 = w1.at[0:D_USER, 0:HID].set(p["wu1"])                 # user block
    w1 = w1.at[D_USER:COL_M1, HID:2 * HID].set(p["wm1b"])     # movie dense block
    w1 = w1.at[COL_M1, HID:2 * HID].set(p["wm1a"][0])         # movie-id path
    w1 = w1.at[COL_ONE, 0:HID].set(p["bu1"][0])               # user bias
    w1 = w1.at[COL_ONE, HID:2 * HID].set(p["bm1"][0])         # movie bias
    w1 = w1.at[COL_ONE, BIAS_HID].set(1.0)                    # constant-1 hidden unit

    w2 = jnp.zeros((HID_F, OUT_W), jnp.float32)
    w2 = w2.at[0:HID, 0:EMB].set(p["wu2"])                    # user block
    w2 = w2.at[HID:2 * HID, EMB:OUT_W].set(p["wm2"])          # movie block
    w2 = w2.at[BIAS_HID, 0:EMB].set(p["bu2"][0])              # user bias
    w2 = w2.at[BIAS_HID, EMB:OUT_W].set(p["bm2"][0])          # movie bias
    return w1.astype(jnp.bfloat16), w2.astype(jnp.bfloat16)


def fuse_inputs(user_features, movie_features):
    """Producer-side layout prep: emit the fused (B, 66) bf16 input [u|m2|m1|1].

    Ideally done once where the features are produced/stored so the hot path
    never pays a separate concat+cast HBM pass.
    NOTE: m1 is carried as a single bf16 column; if m1 were a raw large-magnitude
    id (not a normalized feature), keep an f32 path or a hi/lo split instead.
    """
    (u,) = user_features
    m1, m2 = movie_features
    b = u.shape[0]
    ones = jnp.ones((b, 1), jnp.float32)
    return jnp.concatenate([u, m2, m1, ones], axis=1).astype(jnp.bfloat16)


def _default_bf16_epilogue():
    # bf16 elementwise is native on v6e/v7x; v5e has no bf16 VALU -> keep f32 there.
    try:
        kind = jax.devices()[0].device_kind.lower()
    except Exception:
        return True
    return not ("v5 lite" in kind or "v5e" in kind or "v5litepod" in kind)


def _pick_tb(batch):
    # Large tiles amortize the ~0.35 us per-grid-step overhead. Cap at 2048 rows
    # (~5 MiB of VMEM incl. double-buffered input + f32 intermediates), which is
    # safe on every generation incl. v7x (64 MiB physical / 32 MiB scoped default).
    # Prefer >= 2 grid steps so the "parallel" grid feeds both v7x TensorCores.
    for t in (2048, 1024, 512, 256, 128):
        if batch >= 2 * t:
            return t
    return 128


def two_tower_forward(x_fused, w1, w2, *, tb=None, bf16_epilogue=None):
    """x_fused: (B, 66) bf16 fused input; returns probabilities (B,) f32."""
    B = x_fused.shape[0]
    if bf16_epilogue is None:
        bf16_epilogue = _default_bf16_epilogue()
    if tb is None:
        tb = _pick_tb(B)

    # Pad the batch to a tile multiple (never a single awkward tb=B block).
    Bp = ((B + tb - 1) // tb) * tb
    if Bp != B:
        x_fused = jnp.pad(x_fused, ((0, Bp - B), (0, 0)))
    grid = (Bp // tb,)

    kernel = functools.partial(two_tower_kernel, bf16_epilogue=bf16_epilogue)
    out = pl.pallas_call(
        kernel,
        out_shape=jax.ShapeDtypeStruct((1, Bp), jnp.float32),
        grid_spec=pltpu.PrefetchScalarGridSpec(
            num_scalar_prefetch=0,
            grid=grid,
            in_specs=[
                pl.BlockSpec((tb, X_IN), lambda i: (i, 0)),      # fused input tile
                pl.BlockSpec((X_IN, HID_F), lambda i: (0, 0)),   # W1, resident
                pl.BlockSpec((HID_F, OUT_W), lambda i: (0, 0)),  # W2, resident
            ],
            out_specs=pl.BlockSpec((1, tb), lambda i: (0, i)),   # lane-dense output
        ),
        compiler_params=pltpu.CompilerParams(
            dimension_semantics=("parallel",)),                  # megacore on v7x
    )(x_fused, w1, w2)
    return out.reshape(Bp)[:B]


def reference_forward(user_features, movie_features, p):
    """Pure-JAX f32 reference mirroring the PyTorch forward."""
    (u,) = user_features
    m1, m2 = movie_features
    uh = jnp.maximum(u @ p["wu1"] + p["bu1"], 0.0)
    ue = uh @ p["wu2"] + p["bu2"]
    mh = jnp.maximum(m1 @ p["wm1a"] + m2 @ p["wm1b"] + p["bm1"], 0.0)
    me = mh @ p["wm2"] + p["bm2"]
    return jax.nn.sigmoid(jnp.sum(ue * me, axis=1))


if __name__ == "__main__":
    key = jax.random.PRNGKey(0)
    kp, ku, km1, km2 = jax.random.split(key, 4)

    B = 512  # small demo batch; _pick_tb -> tb=256 -> 2-step "parallel" grid
    raw = init_raw_params(kp)
    w1, w2 = pack_params(raw)

    user_features = [jax.random.normal(ku, (B, D_USER), jnp.float32)]
    movie_features = [jax.random.normal(km1, (B, 1), jnp.float32),
                      jax.random.normal(km2, (B, D_MOV), jnp.float32)]

    x_fused = fuse_inputs(user_features, movie_features)   # producer-side, once
    out = two_tower_forward(x_fused, w1, w2)
    out = jax.block_until_ready(out)

    ref = reference_forward(user_features, movie_features, raw)
    assert out.shape == (B,)
    assert bool(jnp.all((out >= 0.0) & (out <= 1.0)))
    # bf16 MXU operands / folded bf16 biases / approx reciprocal: loosened tol.
    assert jnp.allclose(out, ref, atol=1e-2, rtol=1e-2), \
        float(jnp.max(jnp.abs(out - ref)))

    print("KERNEL_OK")
</pallas_src>

<mosaic_0001>
module attributes {stable_mosaic.version = 11 : i64} {
  func.func @two_tower_kernel(%arg0: i32, %arg1: memref<256x66xbf16, #tpu.memory_space<vmem>>, %arg2: memref<66x65xbf16, #tpu.memory_space<vmem>>, %arg3: memref<65x32xbf16, #tpu.memory_space<vmem>>, %arg4: memref<1x256xf32, #tpu.memory_space<vmem>>) attributes {dimension_semantics = [#tpu.dimension_semantics<parallel>], iteration_bounds = array<i64: 2>, scalar_prefetch = 0 : i64, scratch_operands = 0 : i64, tpu.core_type = #tpu.core_type<tc>, window_params = [{transform_indices = @transform_0, window_bounds = array<i64: 256, 66>}, {pipeline_mode = #tpu.pipeline_mode<synchronous>, transform_indices = @transform_1, window_bounds = array<i64: 66, 65>}, {pipeline_mode = #tpu.pipeline_mode<synchronous>, transform_indices = @transform_2, window_bounds = array<i64: 65, 32>}, {transform_indices = @transform_3, window_bounds = array<i64: 1, 256>}]} {
    %c0 = arith.constant 0 : index
    %c0_0 = arith.constant 0 : index
    %0 = vector.load %arg1[%c0, %c0_0] : memref<256x66xbf16, #tpu.memory_space<vmem>>, vector<256x66xbf16>
    %c0_1 = arith.constant 0 : index
    %c0_2 = arith.constant 0 : index
    %1 = vector.load %arg2[%c0_1, %c0_2] : memref<66x65xbf16, #tpu.memory_space<vmem>>, vector<66x65xbf16>
    %c0_3 = arith.constant 0 : index
    %c0_4 = arith.constant 0 : index
    %2 = vector.load %arg3[%c0_3, %c0_4] : memref<65x32xbf16, #tpu.memory_space<vmem>>, vector<65x32xbf16>
    %cst = arith.constant dense<0.000000e+00> : vector<256x65xf32>
    %3 = tpu.matmul %0, %1, %cst {dimension_numbers = #tpu.dot_dimension_numbers<[1], [0], [0], [1], [0, 0, 1, 1], [], []>} : vector<256x66xbf16>, vector<66x65xbf16>, vector<256x65xf32> -> vector<256x65xf32>
    %4 = arith.truncf %3 : vector<256x65xf32> to vector<256x65xbf16>
    %cst_5 = arith.constant 0.000000e+00 : bf16
    %5 = vector.broadcast %cst_5 : bf16 to vector<256x65xbf16>
    %6 = arith.maximumf %4, %5 : vector<256x65xbf16>
    %cst_6 = arith.constant dense<0.000000e+00> : vector<256x32xf32>
    %7 = tpu.matmul %6, %2, %cst_6 {dimension_numbers = #tpu.dot_dimension_numbers<[1], [0], [0], [1], [0, 0, 1, 1], [], []>} : vector<256x65xbf16>, vector<65x32xbf16>, vector<256x32xf32> -> vector<256x32xf32>
    %8 = vector.extract_strided_slice %7 {offsets = [0, 0], sizes = [256, 16], strides = [1, 1]} : vector<256x32xf32> to vector<256x16xf32>
    %9 = vector.extract_strided_slice %7 {offsets = [0, 16], sizes = [256, 16], strides = [1, 1]} : vector<256x32xf32> to vector<256x16xf32>
    %10 = arith.mulf %8, %9 : vector<256x16xf32>
    %cst_7 = arith.constant 1.000000e+00 : f32
    %11 = vector.broadcast %cst_7 : f32 to vector<16x8xf32>
    %cst_8 = arith.constant dense<0.000000e+00> : vector<256x8xf32>
    %12 = tpu.matmul %10, %11, %cst_8 {dimension_numbers = #tpu.dot_dimension_numbers<[1], [0], [0], [1], [0, 0, 1, 1], [], []>} : vector<256x16xf32>, vector<16x8xf32>, vector<256x8xf32> -> vector<256x8xf32>
    %13 = tpu.transpose %12, [1, 0] : vector<256x8xf32> -> vector<8x256xf32>
    %14 = vector.extract_strided_slice %13 {offsets = [0, 0], sizes = [1, 256], strides = [1, 1]} : vector<8x256xf32> to vector<1x256xf32>
    %cst_9 = arith.constant 0.000000e+00 : f32
    %15 = vector.broadcast %cst_9 : f32 to vector<1x256xf32>
    %16 = arith.subf %15, %14 : vector<1x256xf32>
    %17 = math.exp %16 : vector<1x256xf32>
    %cst_10 = arith.constant 1.000000e+00 : f32
    %18 = vector.broadcast %cst_10 : f32 to vector<1x256xf32>
    %19 = arith.addf %18, %17 : vector<1x256xf32>
    %20 = tpu.reciprocal %19 {approx = true} : vector<1x256xf32> -> vector<1x256xf32>
    %c0_11 = arith.constant 0 : index
    %c0_12 = arith.constant 0 : index
    %21 = vector.load %arg4[%c0_11, %c0_12] : memref<1x256xf32, #tpu.memory_space<vmem>>, vector<1x256xf32>
    tpu.vector_store %arg4[%c0_11, %c0_12], %20 {strides = array<i32>} : memref<1x256xf32, #tpu.memory_space<vmem>>, vector<1x256xf32>,
    return
  }
  func.func @transform_0(%arg0: i32) -> (i32, i32) {
    %c0_i32 = arith.constant 0 : i32
    %c0_i32_0 = arith.constant 0 : i32
    return %arg0, %c0_i32 : i32, i32
  }
  func.func @transform_1(%arg0: i32) -> (i32, i32) {
    %c0_i32 = arith.constant 0 : i32
    %c0_i32_0 = arith.constant 0 : i32
    %c0_i32_1 = arith.constant 0 : i32
    return %c0_i32, %c0_i32_0 : i32, i32
  }
  func.func @transform_2(%arg0: i32) -> (i32, i32) {
    %c0_i32 = arith.constant 0 : i32
    %c0_i32_0 = arith.constant 0 : i32
    %c0_i32_1 = arith.constant 0 : i32
    return %c0_i32, %c0_i32_0 : i32, i32
  }
  func.func @transform_3(%arg0: i32) -> (i32, i32) {
    %c0_i32 = arith.constant 0 : i32
    %c0_i32_0 = arith.constant 0 : i32
    return %c0_i32, %arg0 : i32, i32
  }
}

</mosaic_0001>

<llo_original>
// kernel: tpu_custom_call.1
$region0: #{tpu_custom_call.1}
  #allocation0 [shape = 'u32[]', space=smem, size = 0x4, offset = 0x4, fixed_abs, tag = 'smem constant byte address 0x4 - core index']
  #allocation1 [shape = 'u32[144,128]{1,0:T(1,128)}', space=vmem, size = 0x12000, scoped, tag = 'internal scratch']
  %s0 = inlined_call_operand.vmem [shape: bf16[512,66], index: 0, kind: input, shape index: {}]
  %s1 = inlined_call_operand.vmem [shape: bf16[66,65], index: 1, kind: input, shape index: {}]
  %s2 = inlined_call_operand.vmem [shape: bf16[65,32], index: 2, kind: input, shape index: {}]
  %s3 = inlined_call_operand.hbm [shape: f32[1,512], index: 3, kind: output, shape index: {}]
  %s4 = sld [smem:[#allocation0]]
  $region45: #{tpu_custom_call.1} parent=0
    _
  %s6 = ssub.s32 1, %s4
  %s7 = scalar_select 0, %s6, %s4
  $region1: #{tpu_custom_call.1} parent=0
    #allocation2 [shape = 'u8[2048]{0}', space=vmem, size = 0x800, scoped, tag = 'output window, operand 0']
    #allocation3 [shape = 's32[2]{0}', space=sflag, size = 0x8, scoped, tag = 'scoped memory for tpu_custom_call.1']
    %8 = vsyncpa [#allocation3], 0
    %s9 = scalar_lea.sflag [#allocation3], 1
    %10 = vsyncpa %s9, 0
    loop: start=0, step=1, limit=4
    $region2: #{tpu_custom_call.1} parent=1 // loop_pre_header
      _
    $region3: #{tpu_custom_call.1} parent=1 // loop_header
      %s12 = sphi 0, %s16
      %p13 = scmp.ge.s32.totalorder %s12, 4
      %s22 = sphi 0, %s24
      %s25 = sphi 0, %s22
      %s26 = sphi 0, %s25
      %s42 = sphi 0, %s26
      %s46 = sphi 0, %s46
      %s48 = sphi 0, %s46
      %s49 = sphi 0, %s48
      %s63 = sphi 0, %s49
      %s67 = sphi 0, %s67
      %s69 = sphi 0, %s67
      %s70 = sphi 0, %s69
      %s84 = sphi 0, %s70
      %s90 = sphi 0, %s92
      %s93 = sphi 0, %s90
      %s94 = sphi 0, %s93
      %s110 = sphi 0, %s94
    $region4: #{tpu_custom_call.1} parent=1 // loop_header_branch
      %15 = sbr.rel (%p13) target = $region8
    $region5: #{tpu_custom_call.1} parent=1 // loop_body
      %s17 = ssub.s32 %s12, 1
      %s18 = ssub.s32 %s12, 2
      %s19 = sadd.s32 %s12, 1
      %s20 = ssub.s32 %s12, %s19
      %p21 = scmp.eq.s32.totalorder %s20, 0
      %s23 = sadd.s32 %s22, 1
      %s24 = scalar_select %p21, %s22, %s23
      %p27 = pneg %p21
      %p28 = scmp.eq.s32.totalorder %s12, 1
      %p29 = por %p27, %p28
      %p30 = scmp.ne.s32.totalorder %s22, %s25
      %p31 = scmp.eq.s32.totalorder %s12, 0
      %p32 = por %p30, %p31
      %p33 = scmp.ne.s32.totalorder %s22, %s25
      %p34 = scmp.eq.s32.totalorder %s17, 1
      %p35 = por %p33, %p34
      %p36 = scmp.ne.s32.totalorder %s25, %s26
      %p37 = scmp.eq.s32.totalorder %s17, 0
      %p38 = por %p36, %p37
      %p39 = scmp.ne.s32.totalorder %s25, %s26
      %p40 = scmp.eq.s32.totalorder %s18, 1
      %p41 = por %p39, %p40
      %p43 = scmp.ne.s32.totalorder %s26, %s42
      %p44 = scmp.eq.s32.totalorder %s18, 0
      %p45 = por %p43, %p44
      %s47 = sadd.s32 %s46, 1
      %p50 = scmp.eq.s32.totalorder %s12, 1
      %p51 = scmp.ne.s32.totalorder %s46, %s48
      %p52 = scmp.eq.s32.totalorder %s12, 0
      %p53 = por %p51, %p52
      %p54 = scmp.ne.s32.totalorder %s46, %s48
      %p55 = scmp.eq.s32.totalorder %s17, 1
      %p56 = por %p54, %p55
      %p57 = scmp.ne.s32.totalorder %s48, %s49
      %p58 = scmp.eq.s32.totalorder %s17, 0
      %p59 = por %p57, %p58
      %p60 = scmp.ne.s32.totalorder %s48, %s49
      %p61 = scmp.eq.s32.totalorder %s18, 1
      %p62 = por %p60, %p61
      %p64 = scmp.ne.s32.totalorder %s49, %s63
      %p65 = scmp.eq.s32.totalorder %s18, 0
      %p66 = por %p64, %p65
      %s68 = sadd.s32 %s67, 1
      %p71 = scmp.eq.s32.totalorder %s12, 1
      %p72 = scmp.ne.s32.totalorder %s67, %s69
      %p73 = scmp.eq.s32.totalorder %s12, 0
      %p74 = por %p72, %p73
      %p75 = scmp.ne.s32.totalorder %s67, %s69
      %p76 = scmp.eq.s32.totalorder %s17, 1
      %p77 = por %p75, %p76
      %p78 = scmp.ne.s32.totalorder %s69, %s70
      %p79 = scmp.eq.s32.totalorder %s17, 0
      %p80 = por %p78, %p79
      %p81 = scmp.ne.s32.totalorder %s69, %s70
      %p82 = scmp.eq.s32.totalorder %s18, 1
      %p83 = por %p81, %p82
      %p85 = scmp.ne.s32.totalorder %s70, %s84
      %p86 = scmp.eq.s32.totalorder %s18, 0
      %p87 = por %p85, %p86
      %s88 = ssub.s32 %s12, %s19
      %p89 = scmp.eq.s32.totalorder %s88, 0
      %s91 = sadd.s32 %s90, 1
      %s92 = scalar_select %p89, %s90, %s91
      %p95 = pneg %p89
      %p96 = scmp.eq.s32.totalorder %s12, 1
      %p97 = por %p95, %p96
      %p98 = scmp.ne.s32.totalorder %s90, %s93
      %p99 = scmp.eq.s32.totalorder %s12, 0
      %p100 = por %p98, %p99
      %p101 = scmp.ne.s32.totalorder %s90, %s93
      %p102 = scmp.eq.s32.totalorder %s17, 1
      %p103 = por %p101, %p102
      %p104 = scmp.ne.s32.totalorder %s93, %s94
      %p105 = scmp.eq.s32.totalorder %s17, 0
      %p106 = por %p104, %p105
      %p107 = scmp.ne.s32.totalorder %s93, %s94
      %p108 = scmp.eq.s32.totalorder %s18, 1
      %p109 = por %p107, %p108
      %p111 = scmp.ne.s32.totalorder %s94, %s110
      %p112 = scmp.eq.s32.totalorder %s18, 0
      %p113 = por %p111, %p112
      %p114 = scmp.le.s32.totalorder 1, %s12
      %p115 = scmp.lt.s32.totalorder %s12, 3
      %p116 = pnand %p114, %p115
      %p117 = pneg %p116
      // Predicated region
      $region9: #{tpu_custom_call.1} parent=5 // pred_check
        _
      $region10: #{tpu_custom_call.1} parent=5 // pred_check_branch
        %119 = sbr.rel (%p116) target = $region12
      $region11: #{tpu_custom_call.1} parent=5 // pred_region
        %s120 = ssub.s32 %s12, 1
        // Predicated region
        $region13: #{tpu_custom_call.1} parent=11 // pred_check
          %p121 = pneg %p59
        $region14: #{tpu_custom_call.1} parent=11 // pred_check_branch
          %123 = sbr.rel (%p121) target = $region16
        $region15: #{tpu_custom_call.1} parent=11 // pred_region
          _
        $region16: #{tpu_custom_call.1} parent=11 // pred_fallthru
          _
        // Predicated region
        $region17: #{tpu_custom_call.1} parent=11 // pred_check
          %p124 = pneg %p80
        $region18: #{tpu_custom_call.1} parent=11 // pred_check_branch
          %126 = sbr.rel (%p124) target = $region20
        $region19: #{tpu_custom_call.1} parent=11 // pred_region
          _
        $region20: #{tpu_custom_call.1} parent=11 // pred_fallthru
          _
      $region12: #{tpu_custom_call.1} parent=5 // pred_fallthru
        _
      %p127 = scmp.lt.s32.totalorder %s12, 2
      // Predicated region
      $region21: #{tpu_custom_call.1} parent=5 // pred_check
        %p128 = pneg %p127
      $region22: #{tpu_custom_call.1} parent=5 // pred_check_branch
        %130 = sbr.rel (%p128) target = $region24
      $region23: #{tpu_custom_call.1} parent=5 // pred_region
        // Predicated region
        $region25: #{tpu_custom_call.1} parent=23 // pred_check
          %p131 = pneg %p32
        $region26: #{tpu_custom_call.1} parent=23 // pred_check_branch
          %133 = sbr.rel (%p131) target = $region28
        $region27: #{tpu_custom_call.1} parent=23 // pred_region
          %s134 = smul.u32 32, %s12
          %p135 = scmp.lt.s32.totalorder %s134, 63
          %s136 = scalar_select %p135, %s134, 63
          %s137 = smul.addr %s136, 4
          %s138 = scalar_lea.vmem %s0, %s137
          %s139 = smul.u32 32, %s12
        $region28: #{tpu_custom_call.1} parent=23 // pred_fallthru
          _
      $region24: #{tpu_custom_call.1} parent=5 // pred_fallthru
        _
      %p140 = scmp.le.s32.totalorder 1, %s12
      %p141 = scmp.lt.s32.totalorder %s12, 3
      %p142 = pnand %p140, %p141
      %p143 = pneg %p142
      // Predicated region
      $region29: #{tpu_custom_call.1} parent=5 // pred_check
        _
      $region30: #{tpu_custom_call.1} parent=5 // pred_check_branch
        %145 = sbr.rel (%p142) target = $region32
      $region31: #{tpu_custom_call.1} parent=5 // pred_region
        %s146 = ssub.s32 %s12, 1
        %s147 = smul.u32 32, %s17
        %p148 = scmp.lt.s32.totalorder %s147, 63
        %s149 = scalar_select %p148, %s147, 63
        %s150 = smul.addr %s149, 4
        %s151 = scalar_lea.vmem %s0, %s150
        %p152 = pneg %p38
        %p153 = pneg %p35
        %p154 = pneg %p59
        %p155 = pneg %p56
        %p156 = pneg %p80
        %p157 = pneg %p77
        %p158 = pneg %p106
        %p159 = pneg %p103
        %s160 = sand.u32 %s93, 1
        %s161 = scalar_lea.sflag [#allocation3], %s160
        %s162 = sand.u32 %s93, 1
        %s163 = smul.addr %s162, 2
        %s164 = scalar_lea.vmem [#allocation2], %s163
        %s165 = smul.u32 32, %s17
        %p166 = scmp.lt.s32.totalorder %s165, 63
        %s167 = scalar_select %p166, %s165, 63
        %s168 = smul.addr %s167, 4
        %s169 = scalar_lea.vmem %s0, %s168
        %s170 = smul.u32 32, %s17
        %s171 = smul.u32 2, %s17
        %v173 = vld [vmem:[%s169] sm:$0xf]
        %v174 = vld [vmem:[%s169 + $0x4] sm:$0xf]
        %v175 = vld [vmem:[%s169 + $0x8] sm:$0xf]
        %v176 = vld [vmem:[%s169 + $0xc] sm:$0xf]
        %v177 = vld [vmem:[%s169 + $0x10] sm:$0xf]
        %v178 = vld [vmem:[%s169 + $0x14] sm:$0xf]
        %v179 = vld [vmem:[%s169 + $0x18] sm:$0xf]
        %v180 = vld [vmem:[%s169 + $0x1c] sm:$0xf]
        %v181 = vld [vmem:[%s169 + $0x20] sm:$0xf]
        %v182 = vld [vmem:[%s169 + $0x24] sm:$0xf]
        %v183 = vld [vmem:[%s169 + $0x28] sm:$0xf]
        %v184 = vld [vmem:[%s169 + $0x2c] sm:$0xf]
        %v185 = vld [vmem:[%s169 + $0x30] sm:$0xf]
        %v186 = vld [vmem:[%s169 + $0x34] sm:$0xf]
        %v187 = vld [vmem:[%s169 + $0x38] sm:$0xf]
        %v188 = vld [vmem:[%s169 + $0x3c] sm:$0xf]
        %v189 = vld [vmem:[%s169 + $0x40] sm:$0xf]
        %v190 = vld [vmem:[%s169 + $0x44] sm:$0xf]
        %v191 = vld [vmem:[%s169 + $0x48] sm:$0xf]
        %v192 = vld [vmem:[%s169 + $0x4c] sm:$0xf]
        %v193 = vld [vmem:[%s169 + $0x50] sm:$0xf]
        %v194 = vld [vmem:[%s169 + $0x54] sm:$0xf]
        %v195 = vld [vmem:[%s169 + $0x58] sm:$0xf]
        %v196 = vld [vmem:[%s169 + $0x5c] sm:$0xf]
        %v197 = vld [vmem:[%s169 + $0x60] sm:$0xf]
        %v198 = vld [vmem:[%s169 + $0x64] sm:$0xf]
        %v199 = vld [vmem:[%s169 + $0x68] sm:$0xf]
        %v200 = vld [vmem:[%s169 + $0x6c] sm:$0xf]
        %v201 = vld [vmem:[%s169 + $0x70] sm:$0xf]
        %v202 = vld [vmem:[%s169 + $0x74] sm:$0xf]
        %v203 = vld [vmem:[%s169 + $0x78] sm:$0xf]
        %v204 = vld [vmem:[%s169 + $0x7c] sm:$0xf]
        %v205 = vld [vmem:[%s1] sm:$0xf]
        %v206 = vld [vmem:[%s1 + $0x4] sm:$0xf]
        %v207 = vld [vmem:[%s1 + $0x8] sm:$0xf]
        %v208 = vld [vmem:[%s1 + $0xc] sm:$0xf]
        %v209 = vld [vmem:[%s1 + $0x10] sm:$0xf]
        %v210 = vld [vmem:[%s1 + $0x14] sm:$0xf]
        %v211 = vld [vmem:[%s1 + $0x18] sm:$0xf]
        %v212 = vld [vmem:[%s1 + $0x1c] sm:$0xf]
        %v213 = vld [vmem:[%s1 + $0x20] sm:$0x1]
        %v214 = vld [vmem:[%s2] sm:$0xf]
        %v215 = vld [vmem:[%s2 + $0x4] sm:$0xf]
        %v216 = vld [vmem:[%s2 + $0x8] sm:$0xf]
        %v217 = vld [vmem:[%s2 + $0xc] sm:$0xf]
        %v218 = vld [vmem:[%s2 + $0x10] sm:$0xf]
        %v219 = vld [vmem:[%s2 + $0x14] sm:$0xf]
        %v220 = vld [vmem:[%s2 + $0x18] sm:$0xf]
        %v221 = vld [vmem:[%s2 + $0x1c] sm:$0xf]
        %v222 = vld [vmem:[%s2 + $0x20] sm:$0x1]
        %v255 = vunpack.c.l.b16 %v173
        %v256 = vunpack.c.l.b16 %v174
        %v257 = vunpack.c.l.b16 %v175
        %v258 = vunpack.c.l.b16 %v176
        %v259 = vunpack.c.l.b16 %v177
        %v260 = vunpack.c.l.b16 %v178
        %v261 = vunpack.c.l.b16 %v179
        %v262 = vunpack.c.l.b16 %v180
        %v263 = vunpack.c.l.b16 %v181
        %v264 = vunpack.c.l.b16 %v182
        %v265 = vunpack.c.l.b16 %v183
        %v266 = vunpack.c.l.b16 %v184
        %v267 = vunpack.c.l.b16 %v185
        %v268 = vunpack.c.l.b16 %v186
        %v269 = vunpack.c.l.b16 %v187
        %v270 = vunpack.c.l.b16 %v188
        %v271 = vunpack.c.l.b16 %v189
        %v272 = vunpack.c.l.b16 %v190
        %v273 = vunpack.c.l.b16 %v191
        %v274 = vunpack.c.l.b16 %v192
        %v275 = vunpack.c.l.b16 %v193
        %v276 = vunpack.c.l.b16 %v194
        %v277 = vunpack.c.l.b16 %v195
        %v278 = vunpack.c.l.b16 %v196
        %v279 = vunpack.c.l.b16 %v197
        %v280 = vunpack.c.l.b16 %v198
        %v281 = vunpack.c.l.b16 %v199
        %v282 = vunpack.c.l.b16 %v200
        %v283 = vunpack.c.l.b16 %v201
        %v284 = vunpack.c.l.b16 %v202
        %v285 = vunpack.c.l.b16 %v203
        %v286 = vunpack.c.l.b16 %v204
        %v287 = vpack.c.b16 %v256, %v255
        %v288 = vpack.c.b16 %v258, %v257
        %v289 = vpack.c.b16 %v260, %v259
        %v290 = vpack.c.b16 %v262, %v261
        %v291 = vpack.c.b16 %v264, %v263
        %v292 = vpack.c.b16 %v266, %v265
        %v293 = vpack.c.b16 %v268, %v267
        %v294 = vpack.c.b16 %v270, %v269
        %v295 = vpack.c.b16 %v272, %v271
        %v296 = vpack.c.b16 %v274, %v273
        %v297 = vpack.c.b16 %v276, %v275
        %v298 = vpack.c.b16 %v278, %v277
        %v299 = vpack.c.b16 %v280, %v279
        %v300 = vpack.c.b16 %v282, %v281
        %v301 = vpack.c.b16 %v284, %v283
        %v302 = vpack.c.b16 %v286, %v285
        %v312 = vunpack.c.l.b16 %v205
        %v313 = vunpack.c.l.b16 %v206
        %v314 = vunpack.c.l.b16 %v207
        %v315 = vunpack.c.l.b16 %v208
        %v316 = vunpack.c.l.b16 %v209
        %v317 = vunpack.c.l.b16 %v210
        %v318 = vunpack.c.l.b16 %v211
        %v319 = vunpack.c.l.b16 %v212
        %v320 = vunpack.c.l.b16 %v213
        %v321 = vpack.c.b16 %v313, %v312
        %v322 = vpack.c.b16 %v315, %v314
        %v323 = vpack.c.b16 %v317, %v316
        %v324 = vpack.c.b16 %v319, %v318
        %v325 = vpack.c.b16 %v320, %v320
        %vm330 = vcmask 539648
        %v332 = vsel %vm330, %v287, 0
        %v335 = vsel %vm330, %v288, 0
        %v338 = vsel %vm330, %v289, 0
        %v341 = vsel %vm330, %v290, 0
        %v344 = vsel %vm330, %v291, 0
        %v347 = vsel %vm330, %v292, 0
        %v350 = vsel %vm330, %v293, 0
        %v353 = vsel %vm330, %v294, 0
        %v356 = vsel %vm330, %v295, 0
        %v359 = vsel %vm330, %v296, 0
        %v362 = vsel %vm330, %v297, 0
        %v365 = vsel %vm330, %v298, 0
        %v368 = vsel %vm330, %v299, 0
        %v371 = vsel %vm330, %v300, 0
        %v374 = vsel %vm330, %v301, 0
        %v377 = vsel %vm330, %v302, 0
        %vm379 = vcmask 1040384
        %v381 = vsel %vm379, %v325, 0
        %383 = vmatprep.subr.bf16.mxu0 0
        %384 = vmatpush1.bf16.msra.mxu0 %v321
        %385 = vmatprep.subr.bf16.mxu0 0
        %386 = vmatpush1.bf16.msra.mxu0 %v322
        %387 = vmatprep.subr.bf16.mxu0 0
        %388 = vmatpush1.bf16.msra.mxu0 %v323
        %389 = vmatprep.subr.bf16.mxu0 0
        %390 = vmatpush1.bf16.msra.mxu0 %v324
        %391 = vmatprep.subr.bf16.mxu0 0
        %392 = vmatpush1.bf16.msra.mxu0 %v381
        %393 = vmatprep.subr.bf16.mxu0 0
        %394 = vmatpush1.bf16.msra.mxu0 0
        %395 = vmatprep.subr.bf16.mxu0 0
        %396 = vmatpush1.bf16.msra.mxu0 0
        %397 = vmatprep.subr.bf16.mxu0 0
        %398 = vmatpush1.bf16.msra.mxu0 0
        %399 = vmatprep.subr.bf16.mxu0 0
        %400 = vmatpush1.bf16.msra.mxu0 0
        %401 = vmatprep.subr.bf16.mxu0 0
        %402 = vmatpush1.bf16.msra.mxu0 0
        %403 = vmatprep.subr.bf16.mxu0 0
        %404 = vmatpush1.bf16.msra.mxu0 0
        %405 = vmatprep.subr.bf16.mxu0 0
        %406 = vmatpush1.bf16.msra.mxu0 0
        %407 = vmatprep.subr.bf16.mxu0 0
        %408 = vmatpush1.bf16.msra.mxu0 0
        %409 = vmatprep.subr.bf16.mxu0 0
        %410 = vmatpush1.bf16.msra.mxu0 0
        %411 = vmatprep.subr.bf16.mxu0 0
        %412 = vmatpush1.bf16.msra.mxu0 0
        %413 = vmatprep.subr.bf16.mxu0 0
        %414 = vmatpush1.bf16.msra.mxu0 0
        %415 = vmatprep.mubr.bf16.mxu0 0
        %416 = vmatmul.mubr.bf16.gmra.mrb[0].mxu0 %v332
        %v417 = vpop.f32.mrb[0].mxu0
        %v418 = vadd.f32 0.0, %v417
        %v419 = vpop.f32.mrb[0].mxu0
        %v420 = vpop.f32.mrb[0].mxu0
        %v421 = vadd.f32 0.0, %v420
        %v422 = vpop.f32.mrb[0].mxu0
        %423 = vmatprep.mubr.bf16.mxu0 0
        %424 = vmatmul.mubr.bf16.gmra.mrb[0].mxu0 %v335
        %v425 = vpop.f32.mrb[0].mxu0
        %v426 = vadd.f32 0.0, %v425
        %v427 = vpop.f32.mrb[0].mxu0
        %v428 = vpop.f32.mrb[0].mxu0
        %v429 = vadd.f32 0.0, %v428
        %v430 = vpop.f32.mrb[0].mxu0
        %431 = vmatprep.mubr.bf16.mxu0 0
        %432 = vmatmul.mubr.bf16.gmra.mrb[0].mxu0 %v338
        %v433 = vpop.f32.mrb[0].mxu0
        %v434 = vadd.f32 0.0, %v433
        %v435 = vpop.f32.mrb[0].mxu0
        %v436 = vpop.f32.mrb[0].mxu0
        %v437 = vadd.f32 0.0, %v436
        %v438 = vpop.f32.mrb[0].mxu0
        %439 = vmatprep.mubr.bf16.mxu0 0
        %440 = vmatmul.mubr.bf16.gmra.mrb[0].mxu0 %v341
        %v441 = vpop.f32.mrb[0].mxu0
        %v442 = vadd.f32 0.0, %v441
        %v443 = vpop.f32.mrb[0].mxu0
        %v444 = vpop.f32.mrb[0].mxu0
        %v445 = vadd.f32 0.0, %v444
        %v446 = vpop.f32.mrb[0].mxu0
        %447 = vmatprep.mubr.bf16.mxu0 0
        %448 = vmatmul.mubr.bf16.gmra.mrb[0].mxu0 %v344
        %v449 = vpop.f32.mrb[0].mxu0
        %v450 = vadd.f32 0.0, %v449
        %v451 = vpop.f32.mrb[0].mxu0
        %v452 = vpop.f32.mrb[0].mxu0
        %v453 = vadd.f32 0.0, %v452
        %v454 = vpop.f32.mrb[0].mxu0
        %455 = vmatprep.mubr.bf16.mxu0 0
        %456 = vmatmul.mubr.bf16.gmra.mrb[0].mxu0 %v347
        %v457 = vpop.f32.mrb[0].mxu0
        %v458 = vadd.f32 0.0, %v457
        %v459 = vpop.f32.mrb[0].mxu0
        %v460 = vpop.f32.mrb[0].mxu0
        %v461 = vadd.f32 0.0, %v460
        %v462 = vpop.f32.mrb[0].mxu0
        %463 = vmatprep.mubr.bf16.mxu0 0
        %464 = vmatmul.mubr.bf16.gmra.mrb[0].mxu0 %v350
        %v465 = vpop.f32.mrb[0].mxu0
        %v466 = vadd.f32 0.0, %v465
        %v467 = vpop.f32.mrb[0].mxu0
        %v468 = vpop.f32.mrb[0].mxu0
        %v469 = vadd.f32 0.0, %v468
        %v470 = vpop.f32.mrb[0].mxu0
        %471 = vmatprep.mubr.bf16.mxu0 0
        %472 = vmatmul.mubr.bf16.gmra.mrb[0].mxu0 %v353
        %v473 = vpop.f32.mrb[0].mxu0
        %v474 = vadd.f32 0.0, %v473
        %v475 = vpop.f32.mrb[0].mxu0
        %v476 = vpop.f32.mrb[0].mxu0
        %v477 = vadd.f32 0.0, %v476
        %v478 = vpop.f32.mrb[0].mxu0
        %479 = vmatprep.mubr.bf16.mxu0 0
        %480 = vmatmul.mubr.bf16.gmra.mrb[0].mxu0 %v356
        %v481 = vpop.f32.mrb[0].mxu0
        %v482 = vadd.f32 0.0, %v481
        %v483 = vpop.f32.mrb[0].mxu0
        %v484 = vpop.f32.mrb[0].mxu0
        %v485 = vadd.f32 0.0, %v484
        %v486 = vpop.f32.mrb[0].mxu0
        %487 = vmatprep.mubr.bf16.mxu0 0
        %488 = vmatmul.mubr.bf16.gmra.mrb[0].mxu0 %v359
        %v489 = vpop.f32.mrb[0].mxu0
        %v490 = vadd.f32 0.0, %v489
        %v491 = vpop.f32.mrb[0].mxu0
        %v492 = vpop.f32.mrb[0].mxu0
        %v493 = vadd.f32 0.0, %v492
        %v494 = vpop.f32.mrb[0].mxu0
        %495 = vmatprep.mubr.bf16.mxu0 0
        %496 = vmatmul.mubr.bf16.gmra.mrb[0].mxu0 %v362
        %v497 = vpop.f32.mrb[0].mxu0
        %v498 = vadd.f32 0.0, %v497
        %v499 = vpop.f32.mrb[0].mxu0
        %v500 = vpop.f32.mrb[0].mxu0
        %v501 = vadd.f32 0.0, %v500
        %v502 = vpop.f32.mrb[0].mxu0
        %503 = vmatprep.mubr.bf16.mxu0 0
        %504 = vmatmul.mubr.bf16.gmra.mrb[0].mxu0 %v365
        %v505 = vpop.f32.mrb[0].mxu0
        %v506 = vadd.f32 0.0, %v505
        %v507 = vpop.f32.mrb[0].mxu0
        %v508 = vpop.f32.mrb[0].mxu0
        %v509 = vadd.f32 0.0, %v508
        %v510 = vpop.f32.mrb[0].mxu0
        %511 = vmatprep.mubr.bf16.mxu0 0
        %512 = vmatmul.mubr.bf16.gmra.mrb[0].mxu0 %v368
        %v513 = vpop.f32.mrb[0].mxu0
        %v514 = vadd.f32 0.0, %v513
        %v515 = vpop.f32.mrb[0].mxu0
        %v516 = vpop.f32.mrb[0].mxu0
        %v517 = vadd.f32 0.0, %v516
        %v518 = vpop.f32.mrb[0].mxu0
        %519 = vmatprep.mubr.bf16.mxu0 0
        %520 = vmatmul.mubr.bf16.gmra.mrb[0].mxu0 %v371
        %v521 = vpop.f32.mrb[0].mxu0
        %v522 = vadd.f32 0.0, %v521
        %v523 = vpop.f32.mrb[0].mxu0
        %v524 = vpop.f32.mrb[0].mxu0
        %v525 = vadd.f32 0.0, %v524
        %v526 = vpop.f32.mrb[0].mxu0
        %527 = vmatprep.mubr.bf16.mxu0 0
        %528 = vmatmul.mubr.bf16.gmra.mrb[0].mxu0 %v374
        %v529 = vpop.f32.mrb[0].mxu0
        %v530 = vadd.f32 0.0, %v529
        %v531 = vpop.f32.mrb[0].mxu0
        %v532 = vpop.f32.mrb[0].mxu0
        %v533 = vadd.f32 0.0, %v532
        %v534 = vpop.f32.mrb[0].mxu0
        %535 = vmatprep.mubr.bf16.mxu0 0
        %536 = vmatmul.mubr.bf16.gmra.mrb[0].mxu0 %v377
        %v537 = vpop.f32.mrb[0].mxu0
        %v538 = vadd.f32 0.0, %v537
        %v539 = vpop.f32.mrb[0].mxu0
        %v540 = vpop.f32.mrb[0].mxu0
        %v541 = vadd.f32 0.0, %v540
        %v542 = vpop.f32.mrb[0].mxu0
        %543 = vdwg.mxu0
        %v544 = vpack.c.bf16 %v421, %v418
        %v545 = vpack.c.bf16 %v429, %v426
        %v546 = vpack.c.bf16 %v437, %v434
        %v547 = vpack.c.bf16 %v445, %v442
        %v548 = vpack.c.bf16 %v453, %v450
        %v549 = vpack.c.bf16 %v461, %v458
        %v550 = vpack.c.bf16 %v469, %v466
        %v551 = vpack.c.bf16 %v477, %v474
        %v552 = vpack.c.bf16 %v485, %v482
        %v553 = vpack.c.bf16 %v493, %v490
        %v554 = vpack.c.bf16 %v501, %v498
        %v555 = vpack.c.bf16 %v509, %v506
        %v556 = vpack.c.bf16 %v517, %v514
        %v557 = vpack.c.bf16 %v525, %v522
        %v558 = vpack.c.bf16 %v533, %v530
        %v559 = vpack.c.bf16 %v541, %v538
        %v560 = vmax.bf16 %v544, 0
        %v561 = vmax.bf16 %v545, 0
        %v562 = vmax.bf16 %v546, 0
        %v563 = vmax.bf16 %v547, 0
        %v564 = vmax.bf16 %v548, 0
        %v565 = vmax.bf16 %v549, 0
        %v566 = vmax.bf16 %v550, 0
        %v567 = vmax.bf16 %v551, 0
        %v568 = vmax.bf16 %v552, 0
        %v569 = vmax.bf16 %v553, 0
        %v570 = vmax.bf16 %v554, 0
        %v571 = vmax.bf16 %v555, 0
        %v572 = vmax.bf16 %v556, 0
        %v573 = vmax.bf16 %v557, 0
        %v574 = vmax.bf16 %v558, 0
        %v575 = vmax.bf16 %v559, 0
        %v585 = vunpack.c.l.b16 %v214
        %v586 = vunpack.c.l.b16 %v215
        %v587 = vunpack.c.l.b16 %v216
        %v588 = vunpack.c.l.b16 %v217
        %v589 = vunpack.c.l.b16 %v218
        %v590 = vunpack.c.l.b16 %v219
        %v591 = vunpack.c.l.b16 %v220
        %v592 = vunpack.c.l.b16 %v221
        %v593 = vunpack.c.l.b16 %v222
        %v594 = vpack.c.b16 %v586, %v585
        %v595 = vpack.c.b16 %v588, %v587
        %v596 = vpack.c.b16 %v590, %v589
        %v597 = vpack.c.b16 %v592, %v591
        %v598 = vpack.c.b16 %v593, %v593
        %vm603 = vcmask 531456
        %v605 = vsel %vm603, %v560, 0
        %v608 = vsel %vm603, %v561, 0
        %v611 = vsel %vm603, %v562, 0
        %v614 = vsel %vm603, %v563, 0
        %v617 = vsel %vm603, %v564, 0
        %v620 = vsel %vm603, %v565, 0
        %v623 = vsel %vm603, %v566, 0
        %v626 = vsel %vm603, %v567, 0
        %v629 = vsel %vm603, %v568, 0
        %v632 = vsel %vm603, %v569, 0
        %v635 = vsel %vm603, %v570, 0
        %v638 = vsel %vm603, %v571, 0
        %v641 = vsel %vm603, %v572, 0
        %v644 = vsel %vm603, %v573, 0
        %v647 = vsel %vm603, %v574, 0
        %v650 = vsel %vm603, %v575, 0
        %v652 = vsel 0, 4294967295, 65535
        %v653 = vsel %vm379, %v652, 0
        %v655 = vand.u32 %v598, %v653
        %657 = vmatprep.subr.bf16.mxu0 0
        %658 = vmatpush1.bf16.msra.mxu0 %v594
        %659 = vmatprep.subr.bf16.mxu0 0
        %660 = vmatpush1.bf16.msra.mxu0 %v595
        %661 = vmatprep.subr.bf16.mxu0 0
        %662 = vmatpush1.bf16.msra.mxu0 %v596
        %663 = vmatprep.subr.bf16.mxu0 0
        %664 = vmatpush1.bf16.msra.mxu0 %v597
        %665 = vmatprep.subr.bf16.mxu0 0
        %666 = vmatpush1.bf16.msra.mxu0 %v655
        %667 = vmatprep.subr.bf16.mxu0 0
        %668 = vmatpush1.bf16.msra.mxu0 0
        %669 = vmatprep.subr.bf16.mxu0 0
        %670 = vmatpush1.bf16.msra.mxu0 0
        %671 = vmatprep.subr.bf16.mxu0 0
        %672 = vmatpush1.bf16.msra.mxu0 0
        %673 = vmatprep.subr.bf16.mxu0 0
        %674 = vmatpush1.bf16.msra.mxu0 0
        %675 = vmatprep.subr.bf16.mxu0 0
        %676 = vmatpush1.bf16.msra.mxu0 0
        %677 = vmatprep.subr.bf16.mxu0 0
        %678 = vmatpush1.bf16.msra.mxu0 0
        %679 = vmatprep.subr.bf16.mxu0 0
        %680 = vmatpush1.bf16.msra.mxu0 0
        %681 = vmatprep.subr.bf16.mxu0 0
        %682 = vmatpush1.bf16.msra.mxu0 0
        %683 = vmatprep.subr.bf16.mxu0 0
        %684 = vmatpush1.bf16.msra.mxu0 0
        %685 = vmatprep.subr.bf16.mxu0 0
        %686 = vmatpush1.bf16.msra.mxu0 0
        %687 = vmatprep.subr.bf16.mxu0 0
        %688 = vmatpush1.bf16.msra.mxu0 0
        %689 = vmatprep.mubr.bf16.mxu0 0
        %690 = vmatmul.mubr.bf16.gmra.mrb[0].mxu0 %v605
        %v691 = vpop.f32.mrb[0].mxu0
        %v692 = vadd.f32 0.0, %v691
        %v693 = vpop.f32.mrb[0].mxu0
        %v694 = vpop.f32.mrb[0].mxu0
        %v695 = vadd.f32 0.0, %v694
        %v696 = vpop.f32.mrb[0].mxu0
        %697 = vmatprep.mubr.bf16.mxu0 0
        %698 = vmatmul.mubr.bf16.gmra.mrb[0].mxu0 %v608
        %v699 = vpop.f32.mrb[0].mxu0
        %v700 = vadd.f32 0.0, %v699
        %v701 = vpop.f32.mrb[0].mxu0
        %v702 = vpop.f32.mrb[0].mxu0
        %v703 = vadd.f32 0.0, %v702
        %v704 = vpop.f32.mrb[0].mxu0
        %705 = vmatprep.mubr.bf16.mxu0 0
        %706 = vmatmul.mubr.bf16.gmra.mrb[0].mxu0 %v611
        %v707 = vpop.f32.mrb[0].mxu0
        %v708 = vadd.f32 0.0, %v707
        %v709 = vpop.f32.mrb[0].mxu0
        %v710 = vpop.f32.mrb[0].mxu0
        %v711 = vadd.f32 0.0, %v710
        %v712 = vpop.f32.mrb[0].mxu0
        %713 = vmatprep.mubr.bf16.mxu0 0
        %714 = vmatmul.mubr.bf16.gmra.mrb[0].mxu0 %v614
        %v715 = vpop.f32.mrb[0].mxu0
        %v716 = vadd.f32 0.0, %v715
        %v717 = vpop.f32.mrb[0].mxu0
        %v718 = vpop.f32.mrb[0].mxu0
        %v719 = vadd.f32 0.0, %v718
        %v720 = vpop.f32.mrb[0].mxu0
        %721 = vmatprep.mubr.bf16.mxu0 0
        %722 = vmatmul.mubr.bf16.gmra.mrb[0].mxu0 %v617
        %v723 = vpop.f32.mrb[0].mxu0
        %v724 = vadd.f32 0.0, %v723
        %v725 = vpop.f32.mrb[0].mxu0
        %v726 = vpop.f32.mrb[0].mxu0
        %v727 = vadd.f32 0.0, %v726
        %v728 = vpop.f32.mrb[0].mxu0
        %729 = vmatprep.mubr.bf16.mxu0 0
        %730 = vmatmul.mubr.bf16.gmra.mrb[0].mxu0 %v620
        %v731 = vpop.f32.mrb[0].mxu0
        %v732 = vadd.f32 0.0, %v731
        %v733 = vpop.f32.mrb[0].mxu0
        %v734 = vpop.f32.mrb[0].mxu0
        %v735 = vadd.f32 0.0, %v734
        %v736 = vpop.f32.mrb[0].mxu0
        %737 = vmatprep.mubr.bf16.mxu0 0
        %738 = vmatmul.mubr.bf16.gmra.mrb[0].mxu0 %v623
        %v739 = vpop.f32.mrb[0].mxu0
        %v740 = vadd.f32 0.0, %v739
        %v741 = vpop.f32.mrb[0].mxu0
        %v742 = vpop.f32.mrb[0].mxu0
        %v743 = vadd.f32 0.0, %v742
        %v744 = vpop.f32.mrb[0].mxu0
        %745 = vmatprep.mubr.bf16.mxu0 0
        %746 = vmatmul.mubr.bf16.gmra.mrb[0].mxu0 %v626
        %v747 = vpop.f32.mrb[0].mxu0
        %v748 = vadd.f32 0.0, %v747
        %v749 = vpop.f32.mrb[0].mxu0
        %v750 = vpop.f32.mrb[0].mxu0
        %v751 = vadd.f32 0.0, %v750
        %v752 = vpop.f32.mrb[0].mxu0
        %753 = vmatprep.mubr.bf16.mxu0 0
        %754 = vmatmul.mubr.bf16.gmra.mrb[0].mxu0 %v629
        %v755 = vpop.f32.mrb[0].mxu0
        %v756 = vadd.f32 0.0, %v755
        %v757 = vpop.f32.mrb[0].mxu0
        %v758 = vpop.f32.mrb[0].mxu0
        %v759 = vadd.f32 0.0, %v758
        %v760 = vpop.f32.mrb[0].mxu0
        %761 = vmatprep.mubr.bf16.mxu0 0
        %762 = vmatmul.mubr.bf16.gmra.mrb[0].mxu0 %v632
        %v763 = vpop.f32.mrb[0].mxu0
        %v764 = vadd.f32 0.0, %v763
        %v765 = vpop.f32.mrb[0].mxu0
        %v766 = vpop.f32.mrb[0].mxu0
        %v767 = vadd.f32 0.0, %v766
        %v768 = vpop.f32.mrb[0].mxu0
        %769 = vmatprep.mubr.bf16.mxu0 0
        %770 = vmatmul.mubr.bf16.gmra.mrb[0].mxu0 %v635
        %v771 = vpop.f32.mrb[0].mxu0
        %v772 = vadd.f32 0.0, %v771
        %v773 = vpop.f32.mrb[0].mxu0
        %v774 = vpop.f32.mrb[0].mxu0
        %v775 = vadd.f32 0.0, %v774
        %v776 = vpop.f32.mrb[0].mxu0
        %777 = vmatprep.mubr.bf16.mxu0 0
        %778 = vmatmul.mubr.bf16.gmra.mrb[0].mxu0 %v638
        %v779 = vpop.f32.mrb[0].mxu0
        %v780 = vadd.f32 0.0, %v779
        %v781 = vpop.f32.mrb[0].mxu0
        %v782 = vpop.f32.mrb[0].mxu0
        %v783 = vadd.f32 0.0, %v782
        %v784 = vpop.f32.mrb[0].mxu0
        %785 = vmatprep.mubr.bf16.mxu0 0
        %786 = vmatmul.mubr.bf16.gmra.mrb[0].mxu0 %v641
        %v787 = vpop.f32.mrb[0].mxu0
        %v788 = vadd.f32 0.0, %v787
        %v789 = vpop.f32.mrb[0].mxu0
        %v790 = vpop.f32.mrb[0].mxu0
        %v791 = vadd.f32 0.0, %v790
        %v792 = vpop.f32.mrb[0].mxu0
        %793 = vmatprep.mubr.bf16.mxu0 0
        %794 = vmatmul.mubr.bf16.gmra.mrb[0].mxu0 %v644
        %v795 = vpop.f32.mrb[0].mxu0
        %v796 = vadd.f32 0.0, %v795
        %v797 = vpop.f32.mrb[0].mxu0
        %v798 = vpop.f32.mrb[0].mxu0
        %v799 = vadd.f32 0.0, %v798
        %v800 = vpop.f32.mrb[0].mxu0
        %801 = vmatprep.mubr.bf16.mxu0 0
        %802 = vmatmul.mubr.bf16.gmra.mrb[0].mxu0 %v647
        %v803 = vpop.f32.mrb[0].mxu0
        %v804 = vadd.f32 0.0, %v803
        %v805 = vpop.f32.mrb[0].mxu0
        %v806 = vpop.f32.mrb[0].mxu0
        %v807 = vadd.f32 0.0, %v806
        %v808 = vpop.f32.mrb[0].mxu0
        %809 = vmatprep.mubr.bf16.mxu0 0
        %810 = vmatmul.mubr.bf16.gmra.mrb[0].mxu0 %v650
        %v811 = vpop.f32.mrb[0].mxu0
        %v812 = vadd.f32 0.0, %v811
        %v813 = vpop.f32.mrb[0].mxu0
        %v814 = vpop.f32.mrb[0].mxu0
        %v815 = vadd.f32 0.0, %v814
        %v816 = vpop.f32.mrb[0].mxu0
        %817 = vdwg.mxu0
        %850 = vrot.lane.b32.xlu0 %v692, 112
        %v851 = vpop.permute.xlu0 %850
        %852 = vrot.lane.b32.xlu0 %v695, 112
        %v853 = vpop.permute.xlu0 %852
        %854 = vrot.lane.b32.xlu0 %v700, 112
        %v855 = vpop.permute.xlu0 %854
        %856 = vrot.lane.b32.xlu0 %v703, 112
        %v857 = vpop.permute.xlu0 %856
        %858 = vrot.lane.b32.xlu0 %v708, 112
        %v859 = vpop.permute.xlu0 %858
        %860 = vrot.lane.b32.xlu0 %v711, 112
        %v861 = vpop.permute.xlu0 %860
        %862 = vrot.lane.b32.xlu0 %v716, 112
        %v863 = vpop.permute.xlu0 %862
        %864 = vrot.lane.b32.xlu0 %v719, 112
        %v865 = vpop.permute.xlu0 %864
        %866 = vrot.lane.b32.xlu0 %v724, 112
        %v867 = vpop.permute.xlu0 %866
        %868 = vrot.lane.b32.xlu0 %v727, 112
        %v869 = vpop.permute.xlu0 %868
        %870 = vrot.lane.b32.xlu0 %v732, 112
        %v871 = vpop.permute.xlu0 %870
        %872 = vrot.lane.b32.xlu0 %v735, 112
        %v873 = vpop.permute.xlu0 %872
        %874 = vrot.lane.b32.xlu0 %v740, 112
        %v875 = vpop.permute.xlu0 %874
        %876 = vrot.lane.b32.xlu0 %v743, 112
        %v877 = vpop.permute.xlu0 %876
        %878 = vrot.lane.b32.xlu0 %v748, 112
        %v879 = vpop.permute.xlu0 %878
        %880 = vrot.lane.b32.xlu0 %v751, 112
        %v881 = vpop.permute.xlu0 %880
        %882 = vrot.lane.b32.xlu0 %v756, 112
        %v883 = vpop.permute.xlu0 %882
        %884 = vrot.lane.b32.xlu0 %v759, 112
        %v885 = vpop.permute.xlu0 %884
        %886 = vrot.lane.b32.xlu0 %v764, 112
        %v887 = vpop.permute.xlu0 %886
        %888 = vrot.lane.b32.xlu0 %v767, 112
        %v889 = vpop.permute.xlu0 %888
        %890 = vrot.lane.b32.xlu0 %v772, 112
        %v891 = vpop.permute.xlu0 %890
        %892 = vrot.lane.b32.xlu0 %v775, 112
        %v893 = vpop.permute.xlu0 %892
        %894 = vrot.lane.b32.xlu0 %v780, 112
        %v895 = vpop.permute.xlu0 %894
        %896 = vrot.lane.b32.xlu0 %v783, 112
        %v897 = vpop.permute.xlu0 %896
        %898 = vrot.lane.b32.xlu0 %v788, 112
        %v899 = vpop.permute.xlu0 %898
        %900 = vrot.lane.b32.xlu0 %v791, 112
        %v901 = vpop.permute.xlu0 %900
        %902 = vrot.lane.b32.xlu0 %v796, 112
        %v903 = vpop.permute.xlu0 %902
        %904 = vrot.lane.b32.xlu0 %v799, 112
        %v905 = vpop.permute.xlu0 %904
        %906 = vrot.lane.b32.xlu0 %v804, 112
        %v907 = vpop.permute.xlu0 %906
        %908 = vrot.lane.b32.xlu0 %v807, 112
        %v909 = vpop.permute.xlu0 %908
        %910 = vrot.lane.b32.xlu0 %v812, 112
        %v911 = vpop.permute.xlu0 %910
        %912 = vrot.lane.b32.xlu0 %v815, 112
        %v913 = vpop.permute.xlu0 %912
        %v946 = vmul.f32 %v692, %v851
        %v947 = vmul.f32 %v695, %v853
        %v948 = vmul.f32 %v700, %v855
        %v949 = vmul.f32 %v703, %v857
        %v950 = vmul.f32 %v708, %v859
        %v951 = vmul.f32 %v711, %v861
        %v952 = vmul.f32 %v716, %v863
        %v953 = vmul.f32 %v719, %v865
        %v954 = vmul.f32 %v724, %v867
        %v955 = vmul.f32 %v727, %v869
        %v956 = vmul.f32 %v732, %v871
        %v957 = vmul.f32 %v735, %v873
        %v958 = vmul.f32 %v740, %v875
        %v959 = vmul.f32 %v743, %v877
        %v960 = vmul.f32 %v748, %v879
        %v961 = vmul.f32 %v751, %v881
        %v962 = vmul.f32 %v756, %v883
        %v963 = vmul.f32 %v759, %v885
        %v964 = vmul.f32 %v764, %v887
        %v965 = vmul.f32 %v767, %v889
        %v966 = vmul.f32 %v772, %v891
        %v967 = vmul.f32 %v775, %v893
        %v968 = vmul.f32 %v780, %v895
        %v969 = vmul.f32 %v783, %v897
        %v970 = vmul.f32 %v788, %v899
        %v971 = vmul.f32 %v791, %v901
        %v972 = vmul.f32 %v796, %v903
        %v973 = vmul.f32 %v799, %v905
        %v974 = vmul.f32 %v804, %v907
        %v975 = vmul.f32 %v807, %v909
        %v976 = vmul.f32 %v812, %v911
        %v977 = vmul.f32 %v815, %v913
        %vm978 = vcmask 130048
        %v980 = vsel %vm978, %v946, 0
        %v983 = vsel %vm978, %v947, 0
        %v986 = vsel %vm978, %v948, 0
        %v989 = vsel %vm978, %v949, 0
        %v992 = vsel %vm978, %v950, 0
        %v995 = vsel %vm978, %v951, 0
        %v998 = vsel %vm978, %v952, 0
        %v1001 = vsel %vm978, %v953, 0
        %v1004 = vsel %vm978, %v954, 0
        %v1007 = vsel %vm978, %v955, 0
        %v1010 = vsel %vm978, %v956, 0
        %v1013 = vsel %vm978, %v957, 0
        %v1016 = vsel %vm978, %v958, 0
        %v1019 = vsel %vm978, %v959, 0
        %v1022 = vsel %vm978, %v960, 0
        %v1025 = vsel %vm978, %v961, 0
        %v1028 = vsel %vm978, %v962, 0
        %v1031 = vsel %vm978, %v963, 0
        %v1034 = vsel %vm978, %v964, 0
        %v1037 = vsel %vm978, %v965, 0
        %v1040 = vsel %vm978, %v966, 0
        %v1043 = vsel %vm978, %v967, 0
        %v1046 = vsel %vm978, %v968, 0
        %v1049 = vsel %vm978, %v969, 0
        %v1052 = vsel %vm978, %v970, 0
        %v1055 = vsel %vm978, %v971, 0
        %v1058 = vsel %vm978, %v972, 0
        %v1061 = vsel %vm978, %v973, 0
        %v1064 = vsel %vm978, %v974, 0
        %v1067 = vsel %vm978, %v975, 0
        %v1070 = vsel %vm978, %v976, 0
        %v1073 = vsel %vm978, %v977, 0
        %1075 = vmatprep.subr.mxu0 0.0
        %1076 = vmatpush1.msra.mxu0 1.0
        %1077 = vmatprep.subr.mxu0 0.0
        %1078 = vmatpush1.msra.mxu0 1.0
        %1079 = vmatprep.subr.mxu0 0.0
        %1080 = vmatpush1.msra.mxu0 0.0
        %1081 = vmatprep.subr.mxu0 0.0
        %1082 = vmatpush1.msra.mxu0 0.0
        %1083 = vmatprep.subr.mxu0 0.0
        %1084 = vmatpush1.msra.mxu0 0.0
        %1085 = vmatprep.subr.mxu0 0.0
        %1086 = vmatpush1.msra.mxu0 0.0
        %1087 = vmatprep.subr.mxu0 0.0
        %1088 = vmatpush1.msra.mxu0 0.0
        %1089 = vmatprep.subr.mxu0 0.0
        %1090 = vmatpush1.msra.mxu0 0.0
        %1091 = vmatprep.subr.mxu0 0.0
        %1092 = vmatpush1.msra.mxu0 0.0
        %1093 = vmatprep.subr.mxu0 0.0
        %1094 = vmatpush1.msra.mxu0 0.0
        %1095 = vmatprep.subr.mxu0 0.0
        %1096 = vmatpush1.msra.mxu0 0.0
        %1097 = vmatprep.subr.mxu0 0.0
        %1098 = vmatpush1.msra.mxu0 0.0
        %1099 = vmatprep.subr.mxu0 0.0
        %1100 = vmatpush1.msra.mxu0 0.0
        %1101 = vmatprep.subr.mxu0 0.0
        %1102 = vmatpush1.msra.mxu0 0.0
        %1103 = vmatprep.subr.mxu0 0.0
        %1104 = vmatpush1.msra.mxu0 0.0
        %1105 = vmatprep.subr.mxu0 0.0
        %1106 = vmatpush1.msra.mxu0 0.0
        %1107 = vmatprep.subr.mxu0 0.0
        %1108 = vmatpush1.msra.mxu0 0.0
        %1109 = vmatprep.subr.mxu0 0.0
        %1110 = vmatpush1.msra.mxu0 0.0
        %1111 = vmatprep.subr.mxu0 0.0
        %1112 = vmatpush1.msra.mxu0 0.0
        %1113 = vmatprep.subr.mxu0 0.0
        %1114 = vmatpush1.msra.mxu0 0.0
        %1115 = vmatprep.subr.mxu0 0.0
        %1116 = vmatpush1.msra.mxu0 0.0
        %1117 = vmatprep.subr.mxu0 0.0
        %1118 = vmatpush1.msra.mxu0 0.0
        %1119 = vmatprep.subr.mxu0 0.0
        %1120 = vmatpush1.msra.mxu0 0.0
        %1121 = vmatprep.subr.mxu0 0.0
        %1122 = vmatpush1.msra.mxu0 0.0
        %1123 = vmatprep.subr.mxu0 0.0
        %1124 = vmatpush1.msra.mxu0 0.0
        %1125 = vmatprep.subr.mxu0 0.0
        %1126 = vmatpush1.msra.mxu0 0.0
        %1127 = vmatprep.subr.mxu0 0.0
        %1128 = vmatpush1.msra.mxu0 0.0
        %1129 = vmatprep.subr.mxu0 0.0
        %1130 = vmatpush1.msra.mxu0 0.0
        %1131 = vmatprep.subr.mxu0 0.0
        %1132 = vmatpush1.msra.mxu0 0.0
        %1133 = vmatprep.subr.mxu0 0.0
        %1134 = vmatpush1.msra.mxu0 0.0
        %1135 = vmatprep.subr.mxu0 0.0
        %1136 = vmatpush1.msra.mxu0 0.0
        %1137 = vmatprep.subr.mxu0 0.0
        %1138 = vmatpush1.msra.mxu0 0.0
        %1139 = vmatprep.mubr.f32.mxu0 0.0
        %1140 = vmatmul.mubr.f32.gmra.mrb[0].mxu0 %v980
        %v1141 = vpop.f32.mrb[0].mxu0
        %v1142 = vadd.f32 0.0, %v1141
        %v1143 = vpop.f32.mrb[0].mxu0
        %1144 = vmatprep.mubr.f32.mxu0 0.0
        %1145 = vmatmul.mubr.f32.gmra.mrb[0].mxu0 %v983
        %v1146 = vpop.f32.mrb[0].mxu0
        %v1147 = vadd.f32 0.0, %v1146
        %v1148 = vpop.f32.mrb[0].mxu0
        %1149 = vmatprep.mubr.f32.mxu0 0.0
        %1150 = vmatmul.mubr.f32.gmra.mrb[0].mxu0 %v986
        %v1151 = vpop.f32.mrb[0].mxu0
        %v1152 = vadd.f32 0.0, %v1151
        %v1153 = vpop.f32.mrb[0].mxu0
        %1154 = vmatprep.mubr.f32.mxu0 0.0
        %1155 = vmatmul.mubr.f32.gmra.mrb[0].mxu0 %v989
        %v1156 = vpop.f32.mrb[0].mxu0
        %v1157 = vadd.f32 0.0, %v1156
        %v1158 = vpop.f32.mrb[0].mxu0
        %1159 = vmatprep.mubr.f32.mxu0 0.0
        %1160 = vmatmul.mubr.f32.gmra.mrb[0].mxu0 %v992
        %v1161 = vpop.f32.mrb[0].mxu0
        %v1162 = vadd.f32 0.0, %v1161
        %v1163 = vpop.f32.mrb[0].mxu0
        %1164 = vmatprep.mubr.f32.mxu0 0.0
        %1165 = vmatmul.mubr.f32.gmra.mrb[0].mxu0 %v995
        %v1166 = vpop.f32.mrb[0].mxu0
        %v1167 = vadd.f32 0.0, %v1166
        %v1168 = vpop.f32.mrb[0].mxu0
        %1169 = vmatprep.mubr.f32.mxu0 0.0
        %1170 = vmatmul.mubr.f32.gmra.mrb[0].mxu0 %v998
        %v1171 = vpop.f32.mrb[0].mxu0
        %v1172 = vadd.f32 0.0, %v1171
        %v1173 = vpop.f32.mrb[0].mxu0
        %1174 = vmatprep.mubr.f32.mxu0 0.0
        %1175 = vmatmul.mubr.f32.gmra.mrb[0].mxu0 %v1001
        %v1176 = vpop.f32.mrb[0].mxu0
        %v1177 = vadd.f32 0.0, %v1176
        %v1178 = vpop.f32.mrb[0].mxu0
        %1179 = vmatprep.mubr.f32.mxu0 0.0
        %1180 = vmatmul.mubr.f32.gmra.mrb[0].mxu0 %v1004
        %v1181 = vpop.f32.mrb[0].mxu0
        %v1182 = vadd.f32 0.0, %v1181
        %v1183 = vpop.f32.mrb[0].mxu0
        %1184 = vmatprep.mubr.f32.mxu0 0.0
        %1185 = vmatmul.mubr.f32.gmra.mrb[0].mxu0 %v1007
        %v1186 = vpop.f32.mrb[0].mxu0
        %v1187 = vadd.f32 0.0, %v1186
        %v1188 = vpop.f32.mrb[0].mxu0
        %1189 = vmatprep.mubr.f32.mxu0 0.0
        %1190 = vmatmul.mubr.f32.gmra.mrb[0].mxu0 %v1010
        %v1191 = vpop.f32.mrb[0].mxu0
        %v1192 = vadd.f32 0.0, %v1191
        %v1193 = vpop.f32.mrb[0].mxu0
        %1194 = vmatprep.mubr.f32.mxu0 0.0
        %1195 = vmatmul.mubr.f32.gmra.mrb[0].mxu0 %v1013
        %v1196 = vpop.f32.mrb[0].mxu0
        %v1197 = vadd.f32 0.0, %v1196
        %v1198 = vpop.f32.mrb[0].mxu0
        %1199 = vmatprep.mubr.f32.mxu0 0.0
        %1200 = vmatmul.mubr.f32.gmra.mrb[0].mxu0 %v1016
        %v1201 = vpop.f32.mrb[0].mxu0
        %v1202 = vadd.f32 0.0, %v1201
        %v1203 = vpop.f32.mrb[0].mxu0
        %1204 = vmatprep.mubr.f32.mxu0 0.0
        %1205 = vmatmul.mubr.f32.gmra.mrb[0].mxu0 %v1019
        %v1206 = vpop.f32.mrb[0].mxu0
        %v1207 = vadd.f32 0.0, %v1206
        %v1208 = vpop.f32.mrb[0].mxu0
        %1209 = vmatprep.mubr.f32.mxu0 0.0
        %1210 = vmatmul.mubr.f32.gmra.mrb[0].mxu0 %v1022
        %v1211 = vpop.f32.mrb[0].mxu0
        %v1212 = vadd.f32 0.0, %v1211
        %v1213 = vpop.f32.mrb[0].mxu0
        %1214 = vmatprep.mubr.f32.mxu0 0.0
        %1215 = vmatmul.mubr.f32.gmra.mrb[0].mxu0 %v1025
        %v1216 = vpop.f32.mrb[0].mxu0
        %v1217 = vadd.f32 0.0, %v1216
        %v1218 = vpop.f32.mrb[0].mxu0
        %1219 = vmatprep.mubr.f32.mxu0 0.0
        %1220 = vmatmul.mubr.f32.gmra.mrb[0].mxu0 %v1028
        %v1221 = vpop.f32.mrb[0].mxu0
        %v1222 = vadd.f32 0.0, %v1221
        %v1223 = vpop.f32.mrb[0].mxu0
        %1224 = vmatprep.mubr.f32.mxu0 0.0
        %1225 = vmatmul.mubr.f32.gmra.mrb[0].mxu0 %v1031
        %v1226 = vpop.f32.mrb[0].mxu0
        %v1227 = vadd.f32 0.0, %v1226
        %v1228 = vpop.f32.mrb[0].mxu0
        %1229 = vmatprep.mubr.f32.mxu0 0.0
        %1230 = vmatmul.mubr.f32.gmra.mrb[0].mxu0 %v1034
        %v1231 = vpop.f32.mrb[0].mxu0
        %v1232 = vadd.f32 0.0, %v1231
        %v1233 = vpop.f32.mrb[0].mxu0
        %1234 = vmatprep.mubr.f32.mxu0 0.0
        %1235 = vmatmul.mubr.f32.gmra.mrb[0].mxu0 %v1037
        %v1236 = vpop.f32.mrb[0].mxu0
        %v1237 = vadd.f32 0.0, %v1236
        %v1238 = vpop.f32.mrb[0].mxu0
        %1239 = vmatprep.mubr.f32.mxu0 0.0
        %1240 = vmatmul.mubr.f32.gmra.mrb[0].mxu0 %v1040
        %v1241 = vpop.f32.mrb[0].mxu0
        %v1242 = vadd.f32 0.0, %v1241
        %v1243 = vpop.f32.mrb[0].mxu0
        %1244 = vmatprep.mubr.f32.mxu0 0.0
        %1245 = vmatmul.mubr.f32.gmra.mrb[0].mxu0 %v1043
        %v1246 = vpop.f32.mrb[0].mxu0
        %v1247 = vadd.f32 0.0, %v1246
        %v1248 = vpop.f32.mrb[0].mxu0
        %1249 = vmatprep.mubr.f32.mxu0 0.0
        %1250 = vmatmul.mubr.f32.gmra.mrb[0].mxu0 %v1046
        %v1251 = vpop.f32.mrb[0].mxu0
        %v1252 = vadd.f32 0.0, %v1251
        %v1253 = vpop.f32.mrb[0].mxu0
        %1254 = vmatprep.mubr.f32.mxu0 0.0
        %1255 = vmatmul.mubr.f32.gmra.mrb[0].mxu0 %v1049
        %v1256 = vpop.f32.mrb[0].mxu0
        %v1257 = vadd.f32 0.0, %v1256
        %v1258 = vpop.f32.mrb[0].mxu0
        %1259 = vmatprep.mubr.f32.mxu0 0.0
        %1260 = vmatmul.mubr.f32.gmra.mrb[0].mxu0 %v1052
        %v1261 = vpop.f32.mrb[0].mxu0
        %v1262 = vadd.f32 0.0, %v1261
        %v1263 = vpop.f32.mrb[0].mxu0
        %1264 = vmatprep.mubr.f32.mxu0 0.0
        %1265 = vmatmul.mubr.f32.gmra.mrb[0].mxu0 %v1055
        %v1266 = vpop.f32.mrb[0].mxu0
        %v1267 = vadd.f32 0.0, %v1266
        %v1268 = vpop.f32.mrb[0].mxu0
        %1269 = vmatprep.mubr.f32.mxu0 0.0
        %1270 = vmatmul.mubr.f32.gmra.mrb[0].mxu0 %v1058
        %v1271 = vpop.f32.mrb[0].mxu0
        %v1272 = vadd.f32 0.0, %v1271
        %v1273 = vpop.f32.mrb[0].mxu0
        %1274 = vmatprep.mubr.f32.mxu0 0.0
        %1275 = vmatmul.mubr.f32.gmra.mrb[0].mxu0 %v1061
        %v1276 = vpop.f32.mrb[0].mxu0
        %v1277 = vadd.f32 0.0, %v1276
        %v1278 = vpop.f32.mrb[0].mxu0
        %1279 = vmatprep.mubr.f32.mxu0 0.0
        %1280 = vmatmul.mubr.f32.gmra.mrb[0].mxu0 %v1064
        %v1281 = vpop.f32.mrb[0].mxu0
        %v1282 = vadd.f32 0.0, %v1281
        %v1283 = vpop.f32.mrb[0].mxu0
        %1284 = vmatprep.mubr.f32.mxu0 0.0
        %1285 = vmatmul.mubr.f32.gmra.mrb[0].mxu0 %v1067
        %v1286 = vpop.f32.mrb[0].mxu0
        %v1287 = vadd.f32 0.0, %v1286
        %v1288 = vpop.f32.mrb[0].mxu0
        %1289 = vmatprep.mubr.f32.mxu0 0.0
        %1290 = vmatmul.mubr.f32.gmra.mrb[0].mxu0 %v1070
        %v1291 = vpop.f32.mrb[0].mxu0
        %v1292 = vadd.f32 0.0, %v1291
        %v1293 = vpop.f32.mrb[0].mxu0
        %1294 = vmatprep.mubr.f32.mxu0 0.0
        %1295 = vmatmul.mubr.f32.gmra.mrb[0].mxu0 %v1073
        %v1296 = vpop.f32.mrb[0].mxu0
        %v1297 = vadd.f32 0.0, %v1296
        %v1298 = vpop.f32.mrb[0].mxu0
        %1299 = vdwg.mxu0
        %1300 = vxpose.xlu0.b32.start [1/16] %v1142, 128
        %1301 = vxpose.xlu0.b32.cont [2/16] %v1147, 128
        %1302 = vxpose.xlu0.b32.cont [3/16] %v1152, 128
        %1303 = vxpose.xlu0.b32.cont [4/16] %v1157, 128
        %1304 = vxpose.xlu0.b32.cont [5/16] %v1162, 128
        %1305 = vxpose.xlu0.b32.cont [6/16] %v1167, 128
        %1306 = vxpose.xlu0.b32.cont [7/16] %v1172, 128
        %1307 = vxpose.xlu0.b32.cont [8/16] %v1177, 128
        %1308 = vxpose.xlu0.b32.cont [9/16] %v1182, 128
        %1309 = vxpose.xlu0.b32.cont [10/16] %v1187, 128
        %1310 = vxpose.xlu0.b32.cont [11/16] %v1192, 128
        %1311 = vxpose.xlu0.b32.cont [12/16] %v1197, 128
        %1312 = vxpose.xlu0.b32.cont [13/16] %v1202, 128
        %1313 = vxpose.xlu0.b32.cont [14/16] %v1207, 128
        %1314 = vxpose.xlu0.b32.cont [15/16] %v1212, 128
        %1315 = vxpose.xlu0.b32.end [16/16] %v1217, 128
        %v1316 = vpop.trf.xlu0
        %v1317 = vpop.trf.xlu0
        %v1318 = vpop.trf.xlu0
        %v1319 = vpop.trf.xlu0
        %v1320 = vpop.trf.xlu0
        %v1321 = vpop.trf.xlu0
        %v1322 = vpop.trf.xlu0
        %v1323 = vpop.trf.xlu0
        %v1324 = vpop.trf.xlu0
        %v1325 = vpop.trf.xlu0
        %v1326 = vpop.trf.xlu0
        %v1327 = vpop.trf.xlu0
        %v1328 = vpop.trf.xlu0
        %v1329 = vpop.trf.xlu0
        %v1330 = vpop.trf.xlu0
        %v1331 = vpop.trf.xlu0
        %1332 = vxpose.xlu0.b32.start [1/16] %v1222, 128
        %1333 = vxpose.xlu0.b32.cont [2/16] %v1227, 128
        %1334 = vxpose.xlu0.b32.cont [3/16] %v1232, 128
        %1335 = vxpose.xlu0.b32.cont [4/16] %v1237, 128
        %1336 = vxpose.xlu0.b32.cont [5/16] %v1242, 128
        %1337 = vxpose.xlu0.b32.cont [6/16] %v1247, 128
        %1338 = vxpose.xlu0.b32.cont [7/16] %v1252, 128
        %1339 = vxpose.xlu0.b32.cont [8/16] %v1257, 128
        %1340 = vxpose.xlu0.b32.cont [9/16] %v1262, 128
        %1341 = vxpose.xlu0.b32.cont [10/16] %v1267, 128
        %1342 = vxpose.xlu0.b32.cont [11/16] %v1272, 128
        %1343 = vxpose.xlu0.b32.cont [12/16] %v1277, 128
        %1344 = vxpose.xlu0.b32.cont [13/16] %v1282, 128
        %1345 = vxpose.xlu0.b32.cont [14/16] %v1287, 128
        %1346 = vxpose.xlu0.b32.cont [15/16] %v1292, 128
        %1347 = vxpose.xlu0.b32.end [16/16] %v1297, 128
        %v1348 = vpop.trf.xlu0
        %v1349 = vpop.trf.xlu0
        %v1350 = vpop.trf.xlu0
        %v1351 = vpop.trf.xlu0
        %v1352 = vpop.trf.xlu0
        %v1353 = vpop.trf.xlu0
        %v1354 = vpop.trf.xlu0
        %v1355 = vpop.trf.xlu0
        %v1356 = vpop.trf.xlu0
        %v1357 = vpop.trf.xlu0
        %v1358 = vpop.trf.xlu0
        %v1359 = vpop.trf.xlu0
        %v1360 = vpop.trf.xlu0
        %v1361 = vpop.trf.xlu0
        %v1362 = vpop.trf.xlu0
        %v1363 = vpop.trf.xlu0
        %v1364 = vsub.f32 0.0, %v1316
        %v1365 = vsub.f32 0.0, %v1348
        %v1366 = vmul.f32 %v1364, 1.442695
        %v1367 = vpow.pop %v1366
        %v1368 = vmul.f32 %v1365, 1.442695
        %v1369 = vpow.pop %v1368
        %v1370 = vadd.f32 %v1367, 1.0
        %v1371 = vadd.f32 %v1369, 1.0
        %v1372 = vrcp.pop %v1370
        %v1373 = vrcp.pop %v1371
        %v1376 = vcombine.low %v1372, %v1373
        %v1378 = vunpack.c.l.s4 1966171168
        %v1379 = vunpack.c.0.s8 %v1378
        %v1380 = vlaneseq
        %v1381 = vshrl.u32 %v1380, 7
        %v1382 = vsub.s32 %v1379, %v1381
        %v1383 = vrot.slane %v1376, %v1382
        %v1385 = vunpack.c.l.s4 1966171168
        %v1386 = vunpack.c.0.s8 %v1385
        %v1387 = vlaneseq
        %v1388 = vshrl.u32 %v1387, 7
        %v1389 = vsub.s32 %v1386, %v1388
        %v1390 = vrot.slane %v1383, %v1389
        %v1392 = vlaneseq
        %vm1393 = vcmp.ge.s32.totalorder %v1392, 0
        %vm1394 = vcmp.lt.s32.totalorder %v1392, 256
        %vm1395 = vmand %vm1393, %vm1394
        %1396 = vst.msk [vmem:[%s164] sm:$0x3] %vm1395, %v1390
        %s1397 = sand.u32 %s93, 1
        %s1398 = scalar_lea.sflag [#allocation3], %s1397
        %s1399 = sand.u32 %s93, 1
        %s1400 = smul.addr %s1399, 2
        %s1401 = scalar_lea.vmem [#allocation2], %s1400
        // Predicated region
        $region33: #{tpu_custom_call.1} parent=31 // pred_check
          %p1402 = pneg %p103
        $region34: #{tpu_custom_call.1} parent=31 // pred_check_branch
          %1404 = sbr.rel (%p1402) target = $region36
        $region35: #{tpu_custom_call.1} parent=31 // pred_region
          %s1405 = smul.u32 2, %s17
          %s1407 = ssub.s32 32, 32
          %1408 = vsyncadd %s1398, %s1407
          %s1409 = smul.addr %s1405, 16
          %s1410 = scalar_lea.hbm %s3, %s1409
          %s1412 = sshll.u32 %s1401, 4
          %s1413 = int_to_ptr.vmem [resolvable:$true] %s1412
          %1415 = dma.vmem_to_hbm [thread:$0]  %s1413, 32, %s1410, %s1398
        $region36: #{tpu_custom_call.1} parent=31 // pred_fallthru
          _
      $region32: #{tpu_custom_call.1} parent=5 // pred_fallthru
        _
      %p1416 = scmp.le.s32.totalorder 2, %s12
      // Predicated region
      $region37: #{tpu_custom_call.1} parent=5 // pred_check
        %p1417 = pneg %p1416
      $region38: #{tpu_custom_call.1} parent=5 // pred_check_branch
        %1419 = sbr.rel (%p1417) target = $region40
      $region39: #{tpu_custom_call.1} parent=5 // pred_region
        %s1420 = ssub.s32 %s12, 2
        // Predicated region
        $region41: #{tpu_custom_call.1} parent=39 // pred_check
          %p1421 = pneg %p109
        $region42: #{tpu_custom_call.1} parent=39 // pred_check_branch
          %1423 = sbr.rel (%p1421) target = $region44
        $region43: #{tpu_custom_call.1} parent=39 // pred_region
          %s1424 = sand.u32 %s94, 1
          %s1425 = scalar_lea.sflag [#allocation3], %s1424
          %s1426 = sand.u32 %s94, 1
          %s1427 = smul.addr %s1426, 2
          %s1428 = scalar_lea.vmem [#allocation2], %s1427
          %1429 = dma.done %s1425, 32
        $region44: #{tpu_custom_call.1} parent=39 // pred_fallthru
          _
      $region40: #{tpu_custom_call.1} parent=5 // pred_fallthru
        _
    $region6: #{tpu_custom_call.1} parent=1 // loop_footer
      %s16 = sadd.s32 1, %s12
    $region7: #{tpu_custom_call.1} parent=1 // loop_footer_branch
      %11 = sbr.rel target = $region3
    $region8: #{tpu_custom_call.1} parent=1 // loop_exit
      _
    %1430 = vsyncpa [#allocation3], 1
    %s1431 = scalar_lea.sflag [#allocation3], 1
    %1432 = vsyncpa %s1431, 1

</llo_original>
